<compile_context>
chip_gen: v6e
topology: v6e:2x2x1
jax: 0.10.0
libtpu: 0.0.40
codegen_flags: <defaults>
</compile_context>

<pallas_src>
import jax
import jax.numpy as jnp
from jax.experimental import pallas as pl
from jax.experimental.pallas import tpu as pltpu


_TILE_BYTES_TARGET = 4 << 20   # ~4 MiB per buffered tile (HBM-streaming op)
_SMALL_X_BYTES = 2 << 20       # below this, run a single-block kernel


def _build_positional_table(num_hiddens: int, max_len: int = 1000,
                            dtype=jnp.float32) -> jnp.ndarray:
    """Deterministic sin/cos table, identical to the torch __init__ code."""
    positions = jnp.arange(max_len, dtype=jnp.float32).reshape(-1, 1)
    div = jnp.power(
        10000.0,
        jnp.arange(0, num_hiddens, 2, dtype=jnp.float32) / num_hiddens,
    )
    X = positions / div                              # (max_len, num_hiddens // 2)
    P = jnp.zeros((max_len, num_hiddens), dtype=jnp.float32)
    P = P.at[:, 0::2].set(jnp.sin(X))
    P = P.at[:, 1::2].set(jnp.cos(X))
    # Stored directly in the compute dtype so the forward path never re-casts.
    return P.astype(dtype)                           # (max_len, num_hiddens)


def _physical_vmem_bytes() -> int:
    """Per-core VMEM capacity; conservative 64 MiB (v7x) if query fails."""
    try:
        return int(pltpu.get_tpu_info().vmem_capacity_bytes)
    except Exception:
        return 64 << 20


def _add_kernel(x_ref, p_ref, o_ref):
    # Pure broadcast add; P was already cast to x.dtype outside the kernel,
    # so this is a single clean vadd per vreg.  Broadcasting over the leading
    # (batch/row) dimension is handled by jnp.
    o_ref[...] = x_ref[...] + p_ref[...]


def _forward_single_block(x, p_s):
    """Whole problem fits comfortably in VMEM: one un-gridded pallas_call."""
    return pl.pallas_call(
        _add_kernel,
        out_shape=jax.ShapeDtypeStruct(x.shape, x.dtype),
    )(x, p_s)


def _forward_batch_grid(x, p_table, tile_target, phys_vmem):
    """Layout for H % 128 == 0 and S >= 8: x stays (B, S, H).

    Grid = (seq_blocks, hid_blocks, B); batch innermost so the P tile is only
    re-fetched when the (seq, hid) block changes.  Sublane- and lane-dense for
    any batch size (including B < 8)."""
    B, S, H = x.shape
    itemsize = jnp.dtype(x.dtype).itemsize

    tS = min((S // 8) * 8, 256)                       # multiple of 8
    max_h = max(128, tile_target // (tS * itemsize))
    if max_h >= H:
        tH = H                                        # H is a 128-multiple here
    else:
        tH = max(128, (max_h // 128) * 128)           # 128-multiple; cdiv boundary

    n_s = pl.cdiv(S, tS)
    n_h = pl.cdiv(H, tH)

    # v7x megacore: make sure there are >= 2 blocks to shard when possible.
    if n_s * n_h * B == 1 and S >= 16:
        tS = max(8, (S // 2 // 8) * 8)
        n_s = pl.cdiv(S, tS)

    tile_bytes = tS * tH * itemsize
    vmem_needed = 6 * tile_bytes                      # 4x (x,out dbl-buf) + 2x P
    vmem_limit = int(min(phys_vmem * 0.9, max(32 << 20, 2 * vmem_needed)))

    return pl.pallas_call(
        _add_kernel,
        out_shape=jax.ShapeDtypeStruct((B, S, H), x.dtype),
        grid=(n_s, n_h, B),
        in_specs=[
            pl.BlockSpec((1, tS, tH), lambda si, hj, b: (b, si, hj)),  # x tile
            pl.BlockSpec((tS, tH), lambda si, hj, b: (si, hj)),        # P tile
        ],
        out_specs=pl.BlockSpec((1, tS, tH), lambda si, hj, b: (b, si, hj)),
        input_output_aliases={0: 0},
        compiler_params=pltpu.CompilerParams(
            dimension_semantics=("parallel", "parallel", "parallel"),
            vmem_limit_bytes=vmem_limit,
        ),
        cost_estimate=pl.CostEstimate(
            flops=B * S * H,
            transcendentals=0,
            bytes_accessed=2 * B * S * H * itemsize + S * H * itemsize,
        ),
    )(x, p_table)                                     # full table; BlockSpec slices


def _forward_flat_grid(x, p_table, tile_target, phys_vmem):
    """Fallback layout (H not a 128-multiple, or S < 8): lane-dense (B, S*H)
    slab with P as (1, S*H); columns outer so P stays resident across rows."""
    B, S, H = x.shape
    itemsize = jnp.dtype(x.dtype).itemsize
    N = S * H

    x_flat = x.reshape(B, N)
    p_flat = p_table[:S, :].reshape(1, N)             # one-time layout plumbing

    if B >= 8:
        tB = min((B // 8) * 8, 256)                   # multiple of 8, cdiv rows
    else:
        tB = B                                        # full extent (legal); rare
    max_cols = max(128, tile_target // (tB * itemsize))
    if max_cols >= N:
        tC = N                                        # single full-extent block
    else:
        tC = max(128, (max_cols // 128) * 128)        # 128-multiple; cdiv boundary

    n_rows = pl.cdiv(B, tB)
    n_cols = pl.cdiv(N, tC)

    # v7x megacore: guarantee >= 2 blocks along a parallel axis when possible.
    if n_rows * n_cols == 1 and N >= 256:
        tC = max(128, (N // 2 // 128) * 128)
        n_cols = pl.cdiv(N, tC)

    tile_bytes = tB * tC * itemsize
    vmem_needed = 4 * tile_bytes + 2 * tC * itemsize
    vmem_limit = int(min(phys_vmem * 0.9, max(32 << 20, 2 * vmem_needed)))

    out_flat = pl.pallas_call(
        _add_kernel,
        out_shape=jax.ShapeDtypeStruct((B, N), x.dtype),
        grid=(n_cols, n_rows),                        # cols outer: P reused over rows
        in_specs=[
            pl.BlockSpec((tB, tC), lambda j, i: (i, j)),   # streamed x tile
            pl.BlockSpec((1, tC), lambda j, i: (0, j)),    # shared P tile
        ],
        out_specs=pl.BlockSpec((tB, tC), lambda j, i: (i, j)),
        input_output_aliases={0: 0},
        compiler_params=pltpu.CompilerParams(
            dimension_semantics=("parallel", "parallel"),
            vmem_limit_bytes=vmem_limit,
        ),
        cost_estimate=pl.CostEstimate(
            flops=B * N,
            transcendentals=0,
            bytes_accessed=2 * B * N * itemsize + N * itemsize,
        ),
    )(x_flat, p_flat)
    return out_flat.reshape(B, S, H)


def positional_encoding_forward(x: jnp.ndarray, p_table: jnp.ndarray) -> jnp.ndarray:
    """x: (B, S, H); p_table: (max_len, H). Returns x + P[:S] (eval-mode dropout)."""
    B, S, H = x.shape
    max_len, table_h = p_table.shape
    assert S <= max_len, f"sequence length {S} exceeds table max_len {max_len}"
    assert H == table_h, f"hidden size mismatch: x has {H}, table has {table_h}"

    if p_table.dtype != x.dtype:
        # Normally a no-op: build the table in the compute dtype up front.
        # (Note: PyTorch would promote bf16 x to f32 here; we keep x.dtype.)
        p_table = p_table.astype(x.dtype)

    itemsize = jnp.dtype(x.dtype).itemsize
    x_bytes = B * S * H * itemsize

    # Tiny-input fast path: one block, no grid pipeline.
    if x_bytes <= _SMALL_X_BYTES:
        return _forward_single_block(x, p_table[:S, :])

    phys_vmem = _physical_vmem_bytes()
    budget = max(16 << 20, int(phys_vmem * 0.70))
    tile_target = min(_TILE_BYTES_TARGET, budget // 6)

    if H % 128 == 0 and S >= 8:
        return _forward_batch_grid(x, p_table, tile_target, phys_vmem)
    return _forward_flat_grid(x, p_table, tile_target, phys_vmem)


if __name__ == "__main__":
    key = jax.random.PRNGKey(0)
    k0, k1, k2 = jax.random.split(key, 3)

    # Primary, module-consistent small example: batch=2, seq=8, hidden=32.
    batch, seq_len, num_hiddens = 2, 8, 32
    dropout_p = 0.1   # unused at inference (identity), kept for parity with init
    max_len = 64

    x = jax.random.normal(k0, (batch, seq_len, num_hiddens), dtype=jnp.float32)
    P = _build_positional_table(num_hiddens, max_len=max_len)
    ref = x + P[None, :seq_len, :]
    out = jax.block_until_ready(positional_encoding_forward(x, P))
    assert out.shape == (batch, seq_len, num_hiddens)
    assert jnp.allclose(out, ref, atol=1e-6), "mismatch vs reference (small path)"

    # Also exercise the pipelined grid paths (still modest sizes).
    # (a) batch-grid layout: H a 128-multiple, boundary block along S.
    x2 = jax.random.normal(k1, (4, 640, 256), dtype=jnp.float32)
    P2 = _build_positional_table(256, max_len=1000)
    ref2 = x2 + P2[None, :640, :]
    out2 = jax.block_until_ready(positional_encoding_forward(x2, P2))
    assert jnp.allclose(out2, ref2, atol=1e-6), "mismatch vs reference (batch grid)"

    # (b) flat layout: H not a 128-multiple, cdiv boundary along the S*H axis.
    x3 = jax.random.normal(k2, (40, 171, 96), dtype=jnp.float32)
    P3 = _build_positional_table(96, max_len=256)
    ref3 = x3 + P3[None, :171, :]
    out3 = jax.block_until_ready(positional_encoding_forward(x3, P3))
    assert jnp.allclose(out3, ref3, atol=1e-6), "mismatch vs reference (flat grid)"

    print("KERNEL_OK")
</pallas_src>

<mosaic_0001>
module attributes {stable_mosaic.version = 11 : i64} {
  func.func @_add_kernel(%arg0: memref<2x8x32xf32, #tpu.memory_space<vmem>>, %arg1: memref<8x32xf32, #tpu.memory_space<vmem>>, %arg2: memref<2x8x32xf32, #tpu.memory_space<vmem>>) attributes {dimension_semantics = [], scalar_prefetch = 0 : i64, scratch_operands = 0 : i64, tpu.core_type = #tpu.core_type<tc>} {
    %c0 = arith.constant 0 : index
    %c0_0 = arith.constant 0 : index
    %c0_1 = arith.constant 0 : index
    %0 = vector.load %arg0[%c0, %c0_0, %c0_1] : memref<2x8x32xf32, #tpu.memory_space<vmem>>, vector<2x8x32xf32>
    %c0_2 = arith.constant 0 : index
    %c0_3 = arith.constant 0 : index
    %1 = vector.load %arg1[%c0_2, %c0_3] : memref<8x32xf32, #tpu.memory_space<vmem>>, vector<8x32xf32>
    %2 = vector.shape_cast %1 : vector<8x32xf32> to vector<1x8x32xf32>
    %3 = vector.broadcast %2 : vector<1x8x32xf32> to vector<2x8x32xf32>
    %4 = arith.addf %0, %3 : vector<2x8x32xf32>
    %c0_4 = arith.constant 0 : index
    %c0_5 = arith.constant 0 : index
    %c0_6 = arith.constant 0 : index
    %5 = vector.load %arg2[%c0_4, %c0_5, %c0_6] : memref<2x8x32xf32, #tpu.memory_space<vmem>>, vector<2x8x32xf32>
    tpu.vector_store %arg2[%c0_4, %c0_5, %c0_6], %4 {strides = array<i32>} : memref<2x8x32xf32, #tpu.memory_space<vmem>>, vector<2x8x32xf32>,
    return
  }
}

</mosaic_0001>

<llo_original>
// kernel: tpu_custom_call.1
$region0: #{tpu_custom_call.1}
  #allocation0 [shape = 'u32[]', space=smem, size = 0x4, offset = 0x4, fixed_abs, tag = 'smem constant byte address 0x4 - core index']
  #allocation1 [shape = 'u32[144,128]{1,0:T(1,128)}', space=vmem, size = 0x12000, scoped, tag = 'internal scratch']
  %s0 = inlined_call_operand.hbm [shape: f32[2,8,32], index: 0, kind: input, shape index: {}]
  %s1 = inlined_call_operand.hbm [shape: f32[8,32], index: 1, kind: input, shape index: {}]
  %s2 = inlined_call_operand.hbm [shape: f32[2,8,32], index: 2, kind: output, shape index: {}]
  %s3 = sld [smem:[#allocation0]]
  $region26: #{tpu_custom_call.1} parent=0
    _
  %s5 = ssub.s32 1, %s3
  %s6 = scalar_select 0, %s5, %s3
  $region1: #{tpu_custom_call.1} parent=0
    #allocation2 [shape = 'u8[8192]{0}', space=vmem, size = 0x2000, scoped, tag = 'input window, operand 0, single buffered']
    #allocation3 [shape = 's32[1]{0}', space=sflag, size = 0x4, scoped, tag = 'scoped memory for tpu_custom_call.1']
    #allocation4 [shape = 's32[1]{0}', space=sflag, size = 0x4, scoped, tag = 'scoped memory for tpu_custom_call.1']
    #allocation5 [shape = 'u8[4096]{0}', space=vmem, size = 0x1000, scoped, tag = 'input window, operand 1, single buffered']
    #allocation6 [shape = 's32[1]{0}', space=sflag, size = 0x4, scoped, tag = 'scoped memory for tpu_custom_call.1']
    #allocation7 [shape = 'u8[8192]{0}', space=vmem, size = 0x2000, scoped, tag = 'output window, operand 0, single buffered']
    %7 = vsyncpa [#allocation3], 0
    %8 = vsyncpa [#allocation6], 0
    %9 = vsyncpa [#allocation4], 0
    // Predicated region
    $region2: #{tpu_custom_call.1} parent=1 // pred_check
      _
    $region3: #{tpu_custom_call.1} parent=1 // pred_check_branch
      %11 = sbr.rel (0) target = $region5
    $region4: #{tpu_custom_call.1} parent=1 // pred_region
      %s13 = ssub.s32 256, 256
      %14 = vsyncadd [#allocation3], %s13
      %s15 = sshll.u32 [#allocation2], 4
      %s16 = int_to_ptr.vmem [resolvable:$true] %s15
      %21 = dma.hbm_to_vmem [thread:$0]  %s0, 256, %s16, [#allocation3], 128, 128, 8
    $region5: #{tpu_custom_call.1} parent=1 // pred_fallthru
      _
    // Predicated region
    $region6: #{tpu_custom_call.1} parent=1 // pred_check
      _
    $region7: #{tpu_custom_call.1} parent=1 // pred_check_branch
      %23 = sbr.rel (0) target = $region9
    $region8: #{tpu_custom_call.1} parent=1 // pred_region
      %s25 = ssub.s32 128, 128
      %26 = vsyncadd [#allocation6], %s25
      %s28 = sshll.u32 [#allocation5], 4
      %s29 = int_to_ptr.vmem [resolvable:$true] %s28
      %31 = dma.hbm_to_vmem [thread:$0]  %s1, 128, %s29, [#allocation6]
    $region9: #{tpu_custom_call.1} parent=1 // pred_fallthru
      _
    // Predicated region
    $region10: #{tpu_custom_call.1} parent=1 // pred_check
      _
    $region11: #{tpu_custom_call.1} parent=1 // pred_check_branch
      %33 = sbr.rel (0) target = $region13
    $region12: #{tpu_custom_call.1} parent=1 // pred_region
      %34 = dma.done [#allocation3], 256
    $region13: #{tpu_custom_call.1} parent=1 // pred_fallthru
      _
    // Predicated region
    $region14: #{tpu_custom_call.1} parent=1 // pred_check
      _
    $region15: #{tpu_custom_call.1} parent=1 // pred_check_branch
      %36 = sbr.rel (0) target = $region17
    $region16: #{tpu_custom_call.1} parent=1 // pred_region
      %37 = dma.done [#allocation6], 128
    $region17: #{tpu_custom_call.1} parent=1 // pred_fallthru
      _
    %v38 = vld [vmem:[#allocation2] sm:$0xff]
    %v39 = vld [vmem:[#allocation2 + $0x8] sm:$0xff]
    %v40 = vld [vmem:[#allocation5] sm:$0xff]
    %v41 = vadd.f32 %v38, %v40
    %v42 = vadd.f32 %v39, %v40
    %vm43 = vcmask 261120
    %44 = vst.msk [vmem:[#allocation7] sm:$0xff] %vm43, %v41
    %45 = vst.msk [vmem:[#allocation7 + $0x8] sm:$0xff] %vm43, %v42
    // Predicated region
    $region18: #{tpu_custom_call.1} parent=1 // pred_check
      _
    $region19: #{tpu_custom_call.1} parent=1 // pred_check_branch
      %47 = sbr.rel (0) target = $region21
    $region20: #{tpu_custom_call.1} parent=1 // pred_region
      %s49 = ssub.s32 256, 256
      %50 = vsyncadd [#allocation4], %s49
      %s51 = sshll.u32 [#allocation7], 4
      %s52 = int_to_ptr.vmem [resolvable:$true] %s51
      %57 = dma.vmem_to_hbm [thread:$0]  %s52, 256, %s2, [#allocation4], 128, 128, 8
    $region21: #{tpu_custom_call.1} parent=1 // pred_fallthru
      _
    // Predicated region
    $region22: #{tpu_custom_call.1} parent=1 // pred_check
      _
    $region23: #{tpu_custom_call.1} parent=1 // pred_check_branch
      %59 = sbr.rel (0) target = $region25
    $region24: #{tpu_custom_call.1} parent=1 // pred_region
      %60 = dma.done [#allocation4], 256
    $region25: #{tpu_custom_call.1} parent=1 // pred_fallthru
      _
    %61 = vsyncpa [#allocation3], 1
    %62 = vsyncpa [#allocation6], 1
    %63 = vsyncpa [#allocation4], 1

</llo_original>
